<compile_context>
chip_gen: v6e
topology: v6e:2x2x1
jax: 0.10.0
libtpu: 0.0.40
codegen_flags: <defaults>
</compile_context>

<pallas_src>
import math
import functools

import numpy as np
import jax
import jax.numpy as jnp
from jax import lax
from jax.experimental import pallas as pl
from jax.experimental.pallas import tpu as pltpu

# ----------------------------- config (small) -------------------------------
B = 2                # batch
T_F = 16             # frames per video
T_W = 8              # word sequence length (incl. <start> slot)
FRAMES_IN = 8        # frames_input_size
WORDS_IN = 8         # words_input_size
HIDDEN = 32          # hidden_size
VOCAB = 12           # vocab_size
PROP_WIDTH = [2, 4, 8, 16]
NUM_PROPOSALS = 3
TARGET_STRIDE = 1
TAU = 0.6
RANDOM_P = 0.0       # deterministic proposal choice (matches choose() -> 0)
N_CLIP = 16          # np.linspace(num=16) frames sampled per proposal


# ----------------------------- Pallas kernels --------------------------------
def _encoder_kernel(frames_ref, words_ref, wmask_ref, start_ref,
                    wf_ref, bf_ref, ww_ref, bw_ref, wp_ref, bp_ref, pos_ref,
                    frames_h_ref, words_h_ref, palign_ref, *, scale):
    """One batch item: frame_fc + word_fc(+start_vec) + x-attn + fc_props."""
    f = frames_ref[0]                                  # (T_F, F_IN) f32
    w = words_ref[0]                                   # (T_W, W_IN) f32

    # words_feat[:, 0] = start_vec  (fused elementwise select)
    row = lax.broadcasted_iota(jnp.int32, w.shape, 0)
    w = jnp.where(row == 0, jnp.broadcast_to(start_ref[...], w.shape), w)

    # frame_fc / word_fc : bf16 MXU operands, f32 accumulation (eval: no dropout)
    frames_h = jnp.dot(f.astype(jnp.bfloat16), wf_ref[...],
                       preferred_element_type=jnp.float32) + bf_ref[...]
    words_h = jnp.dot(w.astype(jnp.bfloat16), ww_ref[...],
                      preferred_element_type=jnp.float32) + bw_ref[...]

    frames_h_ref[...] = frames_h[None]                 # ori_frames_feat
    words_h_ref[...] = words_h[None]

    # TODO(synk): DualTransformer not provided; decoding=1 stand-in =
    # single cross-attention: frames attend to (words_h + pos).
    kv = words_h + pos_ref[...]
    q = (frames_h * scale).astype(jnp.bfloat16)        # scale folded into q
    k = kv.astype(jnp.bfloat16)
    s = lax.dot_general(q, k, (((1,), (1,)), ((), ())),
                        preferred_element_type=jnp.float32)   # (T_F, T_W)
    s = s + (1.0 - wmask_ref[0]) * (-1e9)
    s = s - jnp.max(s, axis=-1, keepdims=True)
    p = jnp.exp(s)
    p = p * pl.reciprocal(jnp.sum(p, axis=-1, keepdims=True), approx=True)
    h = jnp.dot(p.astype(jnp.bfloat16), k, preferred_element_type=jnp.float32)

    # fc_props + sigmoid (f32 elementwise)
    logits = jnp.dot(h.astype(jnp.bfloat16), wp_ref[...],
                     preferred_element_type=jnp.float32) + bp_ref[...]
    palign_ref[...] = (1.0 / (1.0 + jnp.exp(-logits)))[None]


def _decoder_kernel(words_h_ref, sel_ref, frames_h_ref, gather_ref,
                    mask_vec_ref, ww_ref, bw_ref, wc_ref, bc_ref, pos_ref,
                    logit_ref, *, scale):
    """One (batch, proposal): mask-words + gather props feat + x-attn + fc_comp."""
    words_h = words_h_ref[0]                           # (T_W, H)
    sel = sel_ref[0]                                   # (T_W, 1)
    frames_h = frames_h_ref[0]                         # (T_F, H)
    gather = gather_ref[0]                             # (N_CLIP, T_F) one-hot

    # token = word_fc(mask_vec)
    token = jnp.dot(mask_vec_ref[...].astype(jnp.bfloat16), ww_ref[...],
                    preferred_element_type=jnp.float32) + bw_ref[...]   # (1, H)

    # words_feat.masked_fill(mask==1,0) + token_masked == where(mask, token, w)
    words_m = jnp.where(sel > 0.5,
                        jnp.broadcast_to(token, words_h.shape),
                        words_h) + pos_ref[...]
    q_full = words_m
    q = q_full[:-1]                                    # (T_W-1, H)

    # _generate_proposals_feat as a one-hot gather matmul (keeps data on device)
    props_feat = jnp.dot(gather.astype(jnp.bfloat16),
                         frames_h.astype(jnp.bfloat16),
                         preferred_element_type=jnp.float32)   # (N_CLIP, H)

    # TODO(synk): DualTransformer not provided; decoding=2 stand-in =
    # single cross-attention: masked words attend to proposal features.
    qs = (q * scale).astype(jnp.bfloat16)
    k = props_feat.astype(jnp.bfloat16)
    s = lax.dot_general(qs, k, (((1,), (1,)), ((), ())),
                        preferred_element_type=jnp.float32)    # (T_W-1, N_CLIP)
    # props_mask is None in the reference -> all keys valid (no additive mask)
    s = s - jnp.max(s, axis=-1, keepdims=True)
    p = jnp.exp(s)
    p = p * pl.reciprocal(jnp.sum(p, axis=-1, keepdims=True), approx=True)
    h2 = jnp.dot(p.astype(jnp.bfloat16), k, preferred_element_type=jnp.float32)

    logits = jnp.dot(h2.astype(jnp.bfloat16), wc_ref[...],
                     preferred_element_type=jnp.float32) + bc_ref[...]
    logit_ref[...] = logits[None]


# ----------------------------- fused device wrappers --------------------------
@jax.jit
def encoder_forward(prep, frames_feat, words_feat, wmask3):
    bsz, t_f, f_in = frames_feat.shape
    _, t_w, w_in = words_feat.shape
    hid = prep['Wf'].shape[1]
    nw = prep['Wp'].shape[1]
    scale = 1.0 / math.sqrt(hid)
    return pl.pallas_call(
        functools.partial(_encoder_kernel, scale=scale),
        out_shape=(
            jax.ShapeDtypeStruct((bsz, t_f, hid), jnp.float32),   # frames_h
            jax.ShapeDtypeStruct((bsz, t_w, hid), jnp.float32),   # words_h
            jax.ShapeDtypeStruct((bsz, t_f, nw), jnp.float32),    # props_align
        ),
        grid=(bsz,),
        in_specs=[
            pl.BlockSpec((1, t_f, f_in), lambda b: (b, 0, 0)),
            pl.BlockSpec((1, t_w, w_in), lambda b: (b, 0, 0)),
            pl.BlockSpec((1, 1, t_w), lambda b: (b, 0, 0)),
            pl.BlockSpec((1, w_in), lambda b: (0, 0)),
            pl.BlockSpec((f_in, hid), lambda b: (0, 0)),
            pl.BlockSpec((1, hid), lambda b: (0, 0)),
            pl.BlockSpec((w_in, hid), lambda b: (0, 0)),
            pl.BlockSpec((1, hid), lambda b: (0, 0)),
            pl.BlockSpec((hid, nw), lambda b: (0, 0)),
            pl.BlockSpec((1, nw), lambda b: (0, 0)),
            pl.BlockSpec((t_w, hid), lambda b: (0, 0)),
        ],
        out_specs=(
            pl.BlockSpec((1, t_f, hid), lambda b: (b, 0, 0)),
            pl.BlockSpec((1, t_w, hid), lambda b: (b, 0, 0)),
            pl.BlockSpec((1, t_f, nw), lambda b: (b, 0, 0)),
        ),
        compiler_params=pltpu.CompilerParams(dimension_semantics=("parallel",)),
    )(frames_feat.astype(jnp.float32), words_feat.astype(jnp.float32), wmask3,
      prep['start_vec'], prep['Wf'], prep['bf'], prep['Ww'], prep['bw'],
      prep['Wp'], prep['bp'], prep['pos'])


@jax.jit
def decoder_forward(prep, words_h, frames_h, sel, gather_onehot):
    bsz, t_w, hid = words_h.shape
    t_f = frames_h.shape[1]
    g_total, n_clip, _ = gather_onehot.shape
    npp = g_total // bsz                       # num_proposals (static)
    w_in = prep['Ww'].shape[0]
    vocab = prep['Wc'].shape[1]
    scale = 1.0 / math.sqrt(hid)
    return pl.pallas_call(
        functools.partial(_decoder_kernel, scale=scale),
        out_shape=jax.ShapeDtypeStruct((g_total, t_w - 1, vocab), jnp.float32),
        grid=(g_total,),
        in_specs=[
            # words/sel/frames re-used per proposal via index_map (no 3x broadcast)
            pl.BlockSpec((1, t_w, hid), lambda g: (g // npp, 0, 0)),
            pl.BlockSpec((1, t_w, 1), lambda g: (g // npp, 0, 0)),
            pl.BlockSpec((1, t_f, hid), lambda g: (g // npp, 0, 0)),
            pl.BlockSpec((1, n_clip, t_f), lambda g: (g, 0, 0)),
            pl.BlockSpec((1, w_in), lambda g: (0, 0)),
            pl.BlockSpec((w_in, hid), lambda g: (0, 0)),
            pl.BlockSpec((1, hid), lambda g: (0, 0)),
            pl.BlockSpec((hid, vocab), lambda g: (0, 0)),
            pl.BlockSpec((1, vocab), lambda g: (0, 0)),
            pl.BlockSpec((t_w, hid), lambda g: (0, 0)),
        ],
        out_specs=pl.BlockSpec((1, t_w - 1, vocab), lambda g: (g, 0, 0)),
        compiler_params=pltpu.CompilerParams(dimension_semantics=("parallel",)),
    )(words_h, sel, frames_h, gather_onehot,
      prep['mask_vec'], prep['Ww'], prep['bw'], prep['Wc'], prep['bc'],
      prep['pos'])


# ----------------------------- host helpers (glue) ----------------------------
def sinusoidal_pos_embedding(num_embeddings, embedding_dim, padding_idx):
    half_dim = embedding_dim // 2
    emb = math.log(10000) / (half_dim - 1)
    freqs = np.exp(np.arange(half_dim, dtype=np.float64) * -emb)
    pos = np.arange(num_embeddings, dtype=np.float64)[:, None] * freqs[None, :]
    table = np.concatenate([np.sin(pos), np.cos(pos)], axis=1).astype(np.float32)
    if embedding_dim % 2 == 1:
        table = np.concatenate([table, np.zeros((num_embeddings, 1), np.float32)], 1)
    if padding_idx is not None:
        table[padding_idx, :] = 0.0
    return table


def select_proposals_host(props_np, valid_np, props_align_np,
                          num_proposals, random_p, tau):
    """Pure-NumPy mirror of _select_proposals (IoU done on host, no device syncs)."""
    bsz = props_np.shape[0]
    pa = props_align_np.reshape(bsz, -1)
    props_flat = props_np.reshape(bsz, -1, 2)
    valid = valid_np.reshape(bsz, -1)
    all_cp, all_idx = [], []
    for i in range(bsz):
        a = np.where(valid[i] == 0, 0.0, pa[i])
        order = np.argsort(-a, kind="stable")
        boxes = props_flat[i][order]                       # sorted by score desc
        alive = boxes[:, 0] >= 0

        def choose():
            if np.random.rand() < random_p:
                return int(np.random.choice(np.arange(int(alive.sum()))))
            return 0

        def pick(nth):
            return int(np.nonzero(alive)[0][nth])

        j = pick(choose())
        cp = [boxes[j]]
        cidx = [order[j]]
        for _ in range(1, num_proposals):
            ref = cp[-1]
            # calculate_IoU_batch, NumPy version
            u0 = np.minimum(ref[0], boxes[:, 0])
            u1 = np.maximum(ref[1], boxes[:, 1])
            i0 = np.maximum(ref[0], boxes[:, 0])
            i1 = np.minimum(ref[1], boxes[:, 1])
            iou = (i1 - i0 + 1.0) / (u1 - u0 + 1.0)
            iou = np.where((u1 - u0) < -1e-5, 0.0, iou)
            iou = np.where(iou < 0.0, 0.0, iou)
            kidx = iou < tau
            if int((kidx & alive).sum()) > 2:
                alive = alive & kidx
            j = pick(choose())
            cp.append(boxes[j])
            cidx.append(order[j])
        all_cp.append(np.stack(cp, 0))
        all_idx.append(np.asarray(cidx, np.int64))
    return np.stack(all_cp, 0).astype(np.float32), np.stack(all_idx, 0)


def build_gather_onehot(props_chosen, target_stride, t_f):
    """One-hot (B*NP, N_CLIP, T_F) selection matrices for _generate_proposals_feat."""
    rows = []
    for b in range(props_chosen.shape[0]):
        for s, e in props_chosen[b]:
            s = int(s) * target_stride
            e = int(e) * target_stride
            clip_len = e - s
            rel = np.linspace(start=0, stop=clip_len - 1, num=N_CLIP).astype(np.int32)
            rel = np.where(rel < 0, rel + (clip_len + 1), rel)  # python neg-index semantics
            abs_idx = s + rel
            oh = np.zeros((N_CLIP, t_f), np.float32)
            oh[np.arange(N_CLIP), abs_idx] = 1.0
            rows.append(oh)
    return np.stack(rows, 0)


def build_mask_selection(words_len_np, weights_np, t_w):
    """Which word positions get replaced by the mask token (host np.random)."""
    bsz = len(words_len_np)
    sel = np.zeros((bsz, t_w, 1), np.float32)
    for i, l in enumerate(words_len_np):
        l = int(l)
        num_masked = l // 3
        if num_masked > 0:
            p = weights_np[i, :l].astype(np.float64)
            p = p / p.sum()
            choices = np.random.choice(np.arange(1, l + 1), num_masked,
                                       replace=False, p=p)
            sel[i, choices, 0] = 1.0
    return sel


# ----------------------------- parameters ------------------------------------
def init_params(key):
    ks = jax.random.split(key, 4)

    def lin(k, din, dout):
        kw, kb = jax.random.split(k)
        return (jax.random.normal(kw, (din, dout), jnp.float32) * 0.1,
                jax.random.normal(kb, (dout,), jnp.float32) * 0.1)

    return {
        'frame_fc': lin(ks[0], FRAMES_IN, HIDDEN),
        'word_fc': lin(ks[1], WORDS_IN, HIDDEN),
        'fc_props': lin(ks[2], HIDDEN, len(PROP_WIDTH)),
        'fc_comp': lin(ks[3], HIDDEN, VOCAB),
        'mask_vec': jnp.zeros((WORDS_IN,), jnp.float32),   # nn.Parameter(zeros)
        'start_vec': jnp.zeros((WORDS_IN,), jnp.float32),  # nn.Parameter(zeros)
    }


def prepare_params(params, t_w):
    """One-time: device-resident bf16 MXU weights, f32 biases, pos table."""
    pos = sinusoidal_pos_embedding(20, HIDDEN, 0)[:t_w]
    prep = {
        'Wf': jnp.asarray(params['frame_fc'][0], jnp.bfloat16),
        'bf': jnp.asarray(params['frame_fc'][1].reshape(1, -1), jnp.float32),
        'Ww': jnp.asarray(params['word_fc'][0], jnp.bfloat16),
        'bw': jnp.asarray(params['word_fc'][1].reshape(1, -1), jnp.float32),
        'Wp': jnp.asarray(params['fc_props'][0], jnp.bfloat16),
        'bp': jnp.asarray(params['fc_props'][1].reshape(1, -1), jnp.float32),
        'Wc': jnp.asarray(params['fc_comp'][0], jnp.bfloat16),
        'bc': jnp.asarray(params['fc_comp'][1].reshape(1, -1), jnp.float32),
        'mask_vec': jnp.asarray(params['mask_vec'].reshape(1, -1), jnp.float32),
        'start_vec': jnp.asarray(params['start_vec'].reshape(1, -1), jnp.float32),
        'pos': jnp.asarray(pos, jnp.float32),
    }
    return prep


# ----------------------------- forward (eval mode) ---------------------------
def main_model_forward(prep, frames_feat, frames_len, words_id, words_feat,
                       words_len, weights, props, props_valid,
                       num_proposals, random_p, tau=0.6):
    bsz, t_f, _ = frames_feat.shape
    t_w = words_feat.shape[1]

    words_len_np = np.asarray(words_len)
    weights_np = np.asarray(weights)
    frames_len_np = np.asarray(frames_len)

    words_mask_np = (np.arange(t_w)[None, :] <
                     (words_len_np + 1)[:, None]).astype(np.float32)
    frames_mask_np = (np.arange(t_f)[None, :] <                       # noqa: F841
                      frames_len_np[:, None]).astype(np.float32)      # (unused, like ref)
    wmask3 = jnp.asarray(words_mask_np[:, None, :])

    # ---- fused kernel 1: encoder path (eval mode: dropout is identity) ----
    frames_h, words_h, props_align = encoder_forward(prep, frames_feat,
                                                     words_feat, wmask3)

    # single D2H sync: proposal selection is data-dependent + np.random driven
    pa_np = np.asarray(props_align)
    props_np = np.asarray(props, np.float32)
    valid_np = np.asarray(props_valid, np.float32)
    props_chosen, props_idx = select_proposals_host(
        props_np, valid_np, pa_np, num_proposals, random_p, tau)

    pa_flat = pa_np.reshape(bsz, -1)
    props_align_g = jnp.asarray(
        np.take_along_axis(pa_flat, props_idx, axis=1).astype(np.float32))

    gather_onehot = jnp.asarray(
        build_gather_onehot(props_chosen, TARGET_STRIDE, t_f))
    sel = jnp.asarray(build_mask_selection(words_len_np, weights_np, t_w))

    # ---- fused kernel 2: mask-words + proposal gather + x-attn + fc_comp ----
    words_logit = decoder_forward(prep, words_h, frames_h, sel, gather_onehot)

    tm1 = t_w - 1
    words_mask = jnp.asarray(words_mask_np)
    words_mask1 = jnp.broadcast_to(words_mask[:, None, :tm1],
                                   (bsz, num_proposals, tm1)
                                   ).reshape(bsz * num_proposals, tm1)
    words_id1 = jnp.broadcast_to(words_id[:, None, :],
                                 (bsz, num_proposals, tm1)
                                 ).reshape(bsz * num_proposals, tm1)

    return {
        'props_chosen': jnp.asarray(props_chosen),
        'props_align': props_align_g,
        'words_logit': words_logit,
        'words_id': words_id1,
        'weights': None,
        'words_mask': words_mask1,
    }


# ----------------------------- driver -----------------------------------------
if __name__ == "__main__":
    np.random.seed(0)
    key = jax.random.PRNGKey(0)
    kp, kf, kw, kid = jax.random.split(key, 4)
    params = init_params(kp)
    prep = prepare_params(params, T_W)

    frames_feat = jax.random.normal(kf, (B, T_F, FRAMES_IN), jnp.float32)
    frames_len = jnp.array([T_F, T_F - 4], jnp.int32)
    words_feat = jax.random.normal(kw, (B, T_W, WORDS_IN), jnp.float32)
    words_len = jnp.array([5, 6], jnp.int32)
    words_id = jax.random.randint(kid, (B, T_W - 1), 0, VOCAB)

    wl = np.asarray(words_len)
    weights_np = np.zeros((B, T_W - 1), np.float32)
    for i in range(B):
        weights_np[i, :wl[i]] = 1.0 / float(wl[i])
    weights = jnp.asarray(weights_np)

    # proposals grid: (frame position t, width w) -> [t, t+w-1]; invalid = -1
    nw = len(PROP_WIDTH)
    props_np = np.full((T_F, nw, 2), -1.0, np.float32)
    valid_np = np.zeros((T_F, nw), np.float32)
    for t in range(T_F):
        for k, w in enumerate(PROP_WIDTH):
            e = t + w - 1
            if e < T_F:
                props_np[t, k] = (t, e)
                valid_np[t, k] = 1.0
    props = jnp.asarray(np.broadcast_to(props_np.reshape(1, T_F * nw, 2),
                                        (B, T_F * nw, 2)).copy())
    props_valid = jnp.asarray(np.broadcast_to(valid_np.reshape(1, T_F * nw),
                                              (B, T_F * nw)).copy())

    out = main_model_forward(prep, frames_feat, frames_len, words_id, words_feat,
                             words_len, weights, props, props_valid,
                             NUM_PROPOSALS, RANDOM_P, TAU)
    jax.block_until_ready(out['words_logit'])
    jax.block_until_ready(out['props_align'])
    jax.block_until_ready(out['words_id'])
    print("KERNEL_OK")
</pallas_src>

<mosaic_0001>
module attributes {stable_mosaic.version = 11 : i64} {
  func.func @_encoder_kernel(%arg0: i32, %arg1: memref<1x16x8xf32, #tpu.memory_space<vmem>>, %arg2: memref<1x8x8xf32, #tpu.memory_space<vmem>>, %arg3: memref<1x1x8xf32, #tpu.memory_space<vmem>>, %arg4: memref<1x8xf32, #tpu.memory_space<vmem>>, %arg5: memref<8x32xbf16, #tpu.memory_space<vmem>>, %arg6: memref<1x32xf32, #tpu.memory_space<vmem>>, %arg7: memref<8x32xbf16, #tpu.memory_space<vmem>>, %arg8: memref<1x32xf32, #tpu.memory_space<vmem>>, %arg9: memref<32x4xbf16, #tpu.memory_space<vmem>>, %arg10: memref<1x4xf32, #tpu.memory_space<vmem>>, %arg11: memref<8x32xf32, #tpu.memory_space<vmem>>, %arg12: memref<1x16x32xf32, #tpu.memory_space<vmem>>, %arg13: memref<1x8x32xf32, #tpu.memory_space<vmem>>, %arg14: memref<1x16x4xf32, #tpu.memory_space<vmem>>) attributes {dimension_semantics = [#tpu.dimension_semantics<parallel>], iteration_bounds = array<i64: 2>, scalar_prefetch = 0 : i64, scratch_operands = 0 : i64, tpu.core_type = #tpu.core_type<tc>, window_params = [{transform_indices = @transform_0, window_bounds = array<i64: 1, 16, 8>}, {transform_indices = @transform_1, window_bounds = array<i64: 1, 8, 8>}, {transform_indices = @transform_2, window_bounds = array<i64: 1, 1, 8>}, {pipeline_mode = #tpu.pipeline_mode<synchronous>, transform_indices = @transform_3, window_bounds = array<i64: 1, 8>}, {pipeline_mode = #tpu.pipeline_mode<synchronous>, transform_indices = @transform_4, window_bounds = array<i64: 8, 32>}, {pipeline_mode = #tpu.pipeline_mode<synchronous>, transform_indices = @transform_5, window_bounds = array<i64: 1, 32>}, {pipeline_mode = #tpu.pipeline_mode<synchronous>, transform_indices = @transform_6, window_bounds = array<i64: 8, 32>}, {pipeline_mode = #tpu.pipeline_mode<synchronous>, transform_indices = @transform_7, window_bounds = array<i64: 1, 32>}, {pipeline_mode = #tpu.pipeline_mode<synchronous>, transform_indices = @transform_8, window_bounds = array<i64: 32, 4>}, {pipeline_mode = #tpu.pipeline_mode<synchronous>, transform_indices = @transform_9, window_bounds = array<i64: 1, 4>}, {pipeline_mode = #tpu.pipeline_mode<synchronous>, transform_indices = @transform_10, window_bounds = array<i64: 8, 32>}, {transform_indices = @transform_11, window_bounds = array<i64: 1, 16, 32>}, {transform_indices = @transform_12, window_bounds = array<i64: 1, 8, 32>}, {transform_indices = @transform_13, window_bounds = array<i64: 1, 16, 4>}]} {
    %c0 = arith.constant 0 : index
    %c0_0 = arith.constant 0 : index
    %c0_1 = arith.constant 0 : index
    %0 = vector.load %arg1[%c0, %c0_0, %c0_1] : memref<1x16x8xf32, #tpu.memory_space<vmem>>, vector<1x16x8xf32>
    %1 = vector.shape_cast %0 : vector<1x16x8xf32> to vector<16x8xf32>
    %c0_2 = arith.constant 0 : index
    %c0_3 = arith.constant 0 : index
    %c0_4 = arith.constant 0 : index
    %2 = vector.load %arg2[%c0_2, %c0_3, %c0_4] : memref<1x8x8xf32, #tpu.memory_space<vmem>>, vector<1x8x8xf32>
    %3 = vector.shape_cast %2 : vector<1x8x8xf32> to vector<8x8xf32>
    %4 = tpu.iota {dimensions = array<i32: 0>} : vector<8x8xi32>
    %c0_i32 = arith.constant 0 : i32
    %5 = vector.broadcast %c0_i32 : i32 to vector<8x8xi32>
    %6 = arith.cmpi eq, %4, %5 : vector<8x8xi32>
    %c0_5 = arith.constant 0 : index
    %c0_6 = arith.constant 0 : index
    %7 = vector.load %arg4[%c0_5, %c0_6] : memref<1x8xf32, #tpu.memory_space<vmem>>, vector<1x8xf32>
    %8 = vector.shape_cast %7 : vector<1x8xf32> to vector<1x8xf32>
    %9 = vector.broadcast %8 : vector<1x8xf32> to vector<8x8xf32>
    %10 = arith.select %6, %9, %3 : vector<8x8xi1>, vector<8x8xf32>
    %11 = arith.truncf %1 : vector<16x8xf32> to vector<16x8xbf16>
    %c0_7 = arith.constant 0 : index
    %c0_8 = arith.constant 0 : index
    %12 = vector.load %arg5[%c0_7, %c0_8] : memref<8x32xbf16, #tpu.memory_space<vmem>>, vector<8x32xbf16>
    %cst = arith.constant dense<0.000000e+00> : vector<16x32xf32>
    %13 = tpu.matmul %11, %12, %cst {dimension_numbers = #tpu.dot_dimension_numbers<[1], [0], [0], [1], [0, 0, 1, 1], [], []>} : vector<16x8xbf16>, vector<8x32xbf16>, vector<16x32xf32> -> vector<16x32xf32>
    %c0_9 = arith.constant 0 : index
    %c0_10 = arith.constant 0 : index
    %14 = vector.load %arg6[%c0_9, %c0_10] : memref<1x32xf32, #tpu.memory_space<vmem>>, vector<1x32xf32>
    %15 = vector.broadcast %14 : vector<1x32xf32> to vector<16x32xf32>
    %16 = arith.addf %13, %15 : vector<16x32xf32>
    %17 = arith.truncf %10 : vector<8x8xf32> to vector<8x8xbf16>
    %c0_11 = arith.constant 0 : index
    %c0_12 = arith.constant 0 : index
    %18 = vector.load %arg7[%c0_11, %c0_12] : memref<8x32xbf16, #tpu.memory_space<vmem>>, vector<8x32xbf16>
    %cst_13 = arith.constant dense<0.000000e+00> : vector<8x32xf32>
    %19 = tpu.matmul %17, %18, %cst_13 {dimension_numbers = #tpu.dot_dimension_numbers<[1], [0], [0], [1], [0, 0, 1, 1], [], []>} : vector<8x8xbf16>, vector<8x32xbf16>, vector<8x32xf32> -> vector<8x32xf32>
    %c0_14 = arith.constant 0 : index
    %c0_15 = arith.constant 0 : index
    %20 = vector.load %arg8[%c0_14, %c0_15] : memref<1x32xf32, #tpu.memory_space<vmem>>, vector<1x32xf32>
    %21 = vector.broadcast %20 : vector<1x32xf32> to vector<8x32xf32>
    %22 = arith.addf %19, %21 : vector<8x32xf32>
    %23 = vector.shape_cast %16 : vector<16x32xf32> to vector<1x16x32xf32>
    %c0_16 = arith.constant 0 : index
    %c0_17 = arith.constant 0 : index
    %c0_18 = arith.constant 0 : index
    %24 = vector.load %arg12[%c0_16, %c0_17, %c0_18] : memref<1x16x32xf32, #tpu.memory_space<vmem>>, vector<1x16x32xf32>
    tpu.vector_store %arg12[%c0_16, %c0_17, %c0_18], %23 {strides = array<i32>} : memref<1x16x32xf32, #tpu.memory_space<vmem>>, vector<1x16x32xf32>,
    %25 = vector.shape_cast %22 : vector<8x32xf32> to vector<1x8x32xf32>
    %c0_19 = arith.constant 0 : index
    %c0_20 = arith.constant 0 : index
    %c0_21 = arith.constant 0 : index
    %26 = vector.load %arg13[%c0_19, %c0_20, %c0_21] : memref<1x8x32xf32, #tpu.memory_space<vmem>>, vector<1x8x32xf32>
    tpu.vector_store %arg13[%c0_19, %c0_20, %c0_21], %25 {strides = array<i32>} : memref<1x8x32xf32, #tpu.memory_space<vmem>>, vector<1x8x32xf32>,
    %c0_22 = arith.constant 0 : index
    %c0_23 = arith.constant 0 : index
    %27 = vector.load %arg11[%c0_22, %c0_23] : memref<8x32xf32, #tpu.memory_space<vmem>>, vector<8x32xf32>
    %28 = arith.addf %22, %27 : vector<8x32xf32>
    %cst_24 = arith.constant 0.176776692 : f32
    %29 = vector.broadcast %cst_24 : f32 to vector<16x32xf32>
    %30 = arith.mulf %16, %29 : vector<16x32xf32>
    %31 = arith.truncf %30 : vector<16x32xf32> to vector<16x32xbf16>
    %32 = arith.truncf %28 : vector<8x32xf32> to vector<8x32xbf16>
    %cst_25 = arith.constant dense<0.000000e+00> : vector<16x8xf32>
    %33 = tpu.matmul %31, %32, %cst_25 {dimension_numbers = #tpu.dot_dimension_numbers<[1], [1], [0], [0], [0, 0, 1, 0], [], []>} : vector<16x32xbf16>, vector<8x32xbf16>, vector<16x8xf32> -> vector<16x8xf32>
    %c0_26 = arith.constant 0 : index
    %c0_27 = arith.constant 0 : index
    %c0_28 = arith.constant 0 : index
    %34 = vector.load %arg3[%c0_26, %c0_27, %c0_28] : memref<1x1x8xf32, #tpu.memory_space<vmem>>, vector<1x1x8xf32>
    %35 = vector.shape_cast %34 : vector<1x1x8xf32> to vector<1x8xf32>
    %cst_29 = arith.constant 1.000000e+00 : f32
    %36 = vector.broadcast %cst_29 : f32 to vector<1x8xf32>
    %37 = arith.subf %36, %35 : vector<1x8xf32>
    %cst_30 = arith.constant -1.000000e+09 : f32
    %38 = vector.broadcast %cst_30 : f32 to vector<1x8xf32>
    %39 = arith.mulf %37, %38 : vector<1x8xf32>
    %40 = vector.broadcast %39 : vector<1x8xf32> to vector<16x8xf32>
    %41 = arith.addf %33, %40 : vector<16x8xf32>
    %cst_31 = arith.constant dense<0xFF800000> : vector<16xf32>
    %42 = vector.multi_reduction <maximumf>, %41, %cst_31 [1] : vector<16x8xf32> to vector<16xf32>
    %43 = vector.shape_cast %42 : vector<16xf32> to vector<16x1xf32>
    %44 = vector.broadcast %43 : vector<16x1xf32> to vector<16x8xf32>
    %45 = arith.subf %41, %44 : vector<16x8xf32>
    %46 = math.exp %45 : vector<16x8xf32>
    %cst_32 = arith.constant dense<0.000000e+00> : vector<16xf32>
    %47 = vector.multi_reduction <add>, %46, %cst_32 [1] : vector<16x8xf32> to vector<16xf32>
    %48 = vector.shape_cast %47 : vector<16xf32> to vector<16x1xf32>
    %49 = tpu.reciprocal %48 {approx = true} : vector<16x1xf32> -> vector<16x1xf32>
    %50 = vector.broadcast %49 : vector<16x1xf32> to vector<16x8xf32>
    %51 = arith.mulf %46, %50 : vector<16x8xf32>
    %52 = arith.truncf %51 : vector<16x8xf32> to vector<16x8xbf16>
    %cst_33 = arith.constant dense<0.000000e+00> : vector<16x32xf32>
    %53 = tpu.matmul %52, %32, %cst_33 {dimension_numbers = #tpu.dot_dimension_numbers<[1], [0], [0], [1], [0, 0, 1, 1], [], []>} : vector<16x8xbf16>, vector<8x32xbf16>, vector<16x32xf32> -> vector<16x32xf32>
    %54 = arith.truncf %53 : vector<16x32xf32> to vector<16x32xbf16>
    %c0_34 = arith.constant 0 : index
    %c0_35 = arith.constant 0 : index
    %55 = vector.load %arg9[%c0_34, %c0_35] : memref<32x4xbf16, #tpu.memory_space<vmem>>, vector<32x4xbf16>
    %cst_36 = arith.constant dense<0.000000e+00> : vector<16x4xf32>
    %56 = tpu.matmul %54, %55, %cst_36 {dimension_numbers = #tpu.dot_dimension_numbers<[1], [0], [0], [1], [0, 0, 1, 1], [], []>} : vector<16x32xbf16>, vector<32x4xbf16>, vector<16x4xf32> -> vector<16x4xf32>
    %c0_37 = arith.constant 0 : index
    %c0_38 = arith.constant 0 : index
    %57 = vector.load %arg10[%c0_37, %c0_38] : memref<1x4xf32, #tpu.memory_space<vmem>>, vector<1x4xf32>
    %58 = vector.broadcast %57 : vector<1x4xf32> to vector<16x4xf32>
    %59 = arith.addf %56, %58 : vector<16x4xf32>
    %cst_39 = arith.constant 0.000000e+00 : f32
    %60 = vector.broadcast %cst_39 : f32 to vector<16x4xf32>
    %61 = arith.subf %60, %59 : vector<16x4xf32>
    %62 = math.exp %61 : vector<16x4xf32>
    %cst_40 = arith.constant 1.000000e+00 : f32
    %63 = vector.broadcast %cst_40 : f32 to vector<16x4xf32>
    %64 = arith.addf %63, %62 : vector<16x4xf32>
    %cst_41 = arith.constant 1.000000e+00 : f32
    %65 = vector.broadcast %cst_41 : f32 to vector<16x4xf32>
    %66 = arith.divf %65, %64 : vector<16x4xf32>
    %67 = vector.shape_cast %66 : vector<16x4xf32> to vector<1x16x4xf32>
    %c0_42 = arith.constant 0 : index
    %c0_43 = arith.constant 0 : index
    %c0_44 = arith.constant 0 : index
    %68 = vector.load %arg14[%c0_42, %c0_43, %c0_44] : memref<1x16x4xf32, #tpu.memory_space<vmem>>, vector<1x16x4xf32>
    tpu.vector_store %arg14[%c0_42, %c0_43, %c0_44], %67 {strides = array<i32>} : memref<1x16x4xf32, #tpu.memory_space<vmem>>, vector<1x16x4xf32>,
    return
  }
  func.func @transform_0(%arg0: i32) -> (i32, i32, i32) {
    %c0_i32 = arith.constant 0 : i32
    %c0_i32_0 = arith.constant 0 : i32
    %c0_i32_1 = arith.constant 0 : i32
    return %arg0, %c0_i32, %c0_i32_0 : i32, i32, i32
  }
  func.func @transform_1(%arg0: i32) -> (i32, i32, i32) {
    %c0_i32 = arith.constant 0 : i32
    %c0_i32_0 = arith.constant 0 : i32
    %c0_i32_1 = arith.constant 0 : i32
    return %arg0, %c0_i32, %c0_i32_0 : i32, i32, i32
  }
  func.func @transform_2(%arg0: i32) -> (i32, i32, i32) {
    %c0_i32 = arith.constant 0 : i32
    %c0_i32_0 = arith.constant 0 : i32
    %c0_i32_1 = arith.constant 0 : i32
    return %arg0, %c0_i32, %c0_i32_0 : i32, i32, i32
  }
  func.func @transform_3(%arg0: i32) -> (i32, i32) {
    %c0_i32 = arith.constant 0 : i32
    %c0_i32_0 = arith.constant 0 : i32
    %c0_i32_1 = arith.constant 0 : i32
    return %c0_i32, %c0_i32_0 : i32, i32
  }
  func.func @transform_4(%arg0: i32) -> (i32, i32) {
    %c0_i32 = arith.constant 0 : i32
    %c0_i32_0 = arith.constant 0 : i32
    %c0_i32_1 = arith.constant 0 : i32
    return %c0_i32, %c0_i32_0 : i32, i32
  }
  func.func @transform_5(%arg0: i32) -> (i32, i32) {
    %c0_i32 = arith.constant 0 : i32
    %c0_i32_0 = arith.constant 0 : i32
    %c0_i32_1 = arith.constant 0 : i32
    return %c0_i32, %c0_i32_0 : i32, i32
  }
  func.func @transform_6(%arg0: i32) -> (i32, i32) {
    %c0_i32 = arith.constant 0 : i32
    %c0_i32_0 = arith.constant 0 : i32
    %c0_i32_1 = arith.constant 0 : i32
    return %c0_i32, %c0_i32_0 : i32, i32
  }
  func.func @transform_7(%arg0: i32) -> (i32, i32) {
    %c0_i32 = arith.constant 0 : i32
    %c0_i32_0 = arith.constant 0 : i32
    %c0_i32_1 = arith.constant 0 : i32
    return %c0_i32, %c0_i32_0 : i32, i32
  }
  func.func @transform_8(%arg0: i32) -> (i32, i32) {
    %c0_i32 = arith.constant 0 : i32
    %c0_i32_0 = arith.constant 0 : i32
    %c0_i32_1 = arith.constant 0 : i32
    return %c0_i32, %c0_i32_0 : i32, i32
  }
  func.func @transform_9(%arg0: i32) -> (i32, i32) {
    %c0_i32 = arith.constant 0 : i32
    %c0_i32_0 = arith.constant 0 : i32
    %c0_i32_1 = arith.constant 0 : i32
    return %c0_i32, %c0_i32_0 : i32, i32
  }
  func.func @transform_10(%arg0: i32) -> (i32, i32) {
    %c0_i32 = arith.constant 0 : i32
    %c0_i32_0 = arith.constant 0 : i32
    %c0_i32_1 = arith.constant 0 : i32
    return %c0_i32, %c0_i32_0 : i32, i32
  }
  func.func @transform_11(%arg0: i32) -> (i32, i32, i32) {
    %c0_i32 = arith.constant 0 : i32
    %c0_i32_0 = arith.constant 0 : i32
    %c0_i32_1 = arith.constant 0 : i32
    return %arg0, %c0_i32, %c0_i32_0 : i32, i32, i32
  }
  func.func @transform_12(%arg0: i32) -> (i32, i32, i32) {
    %c0_i32 = arith.constant 0 : i32
    %c0_i32_0 = arith.constant 0 : i32
    %c0_i32_1 = arith.constant 0 : i32
    return %arg0, %c0_i32, %c0_i32_0 : i32, i32, i32
  }
  func.func @transform_13(%arg0: i32) -> (i32, i32, i32) {
    %c0_i32 = arith.constant 0 : i32
    %c0_i32_0 = arith.constant 0 : i32
    %c0_i32_1 = arith.constant 0 : i32
    return %arg0, %c0_i32, %c0_i32_0 : i32, i32, i32
  }
}

</mosaic_0001>

<llo_original>
// kernel: encoder_forward.1
$region0: #{encoder_forward.1}
  #allocation0 [shape = 'u32[]', space=smem, size = 0x4, offset = 0x4, fixed_abs, tag = 'smem constant byte address 0x4 - core index']
  #allocation1 [shape = 'u32[144,128]{1,0:T(1,128)}', space=vmem, size = 0x12000, scoped, tag = 'internal scratch']
  %s0 = inlined_call_operand.vmem [shape: f32[2,16,8], index: 0, kind: input, shape index: {}]
  %s1 = inlined_call_operand.vmem [shape: f32[2,8,8], index: 1, kind: input, shape index: {}]
  %s2 = inlined_call_operand.vmem [shape: f32[2,1,8], index: 2, kind: input, shape index: {}]
  %s3 = inlined_call_operand.vmem [shape: f32[1,8], index: 3, kind: input, shape index: {}]
  %s4 = inlined_call_operand.vmem [shape: bf16[8,32], index: 4, kind: input, shape index: {}]
  %s5 = inlined_call_operand.vmem [shape: f32[1,32], index: 5, kind: input, shape index: {}]
  %s6 = inlined_call_operand.vmem [shape: bf16[8,32], index: 6, kind: input, shape index: {}]
  %s7 = inlined_call_operand.vmem [shape: f32[1,32], index: 7, kind: input, shape index: {}]
  %s8 = inlined_call_operand.vmem [shape: bf16[32,4], index: 8, kind: input, shape index: {}]
  %s9 = inlined_call_operand.vmem [shape: f32[1,4], index: 9, kind: input, shape index: {}]
  %s10 = inlined_call_operand.vmem [shape: f32[8,32], index: 10, kind: input, shape index: {}]
  %s11 = inlined_call_operand.hbm [shape: f32[2,16,32], index: 11, kind: output, shape index: {0}]
  %s12 = inlined_call_operand.hbm [shape: f32[2,8,32], index: 12, kind: output, shape index: {1}]
  %s13 = inlined_call_operand.vmem [shape: f32[2,16,4], index: 13, kind: output, shape index: {2}]
  %14 = xla_tuple %s11, %s12, %s13
  %s15 = sld [smem:[#allocation0]]
  $region93: #{encoder_forward.1} parent=0
    _
  %s17 = ssub.s32 1, %s15
  %s18 = scalar_select 0, %s17, %s15
  $region1: #{encoder_forward.1} parent=0
    #allocation2 [shape = 'u8[16384]{0}', space=vmem, size = 0x4000, scoped, tag = 'output window, operand 0']
    #allocation3 [shape = 's32[2]{0}', space=sflag, size = 0x8, scoped, tag = 'scoped memory for encoder_forward.1']
    #allocation4 [shape = 'u8[8192]{0}', space=vmem, size = 0x2000, scoped, tag = 'output window, operand 1']
    #allocation5 [shape = 's32[2]{0}', space=sflag, size = 0x8, scoped, tag = 'scoped memory for encoder_forward.1']
    %19 = vsyncpa [#allocation3], 0
    %s20 = scalar_lea.sflag [#allocation3], 1
    %21 = vsyncpa %s20, 0
    %22 = vsyncpa [#allocation5], 0
    %s23 = scalar_lea.sflag [#allocation5], 1
    %24 = vsyncpa %s23, 0
    loop: start=0, step=1, limit=4
    $region2: #{encoder_forward.1} parent=1 // loop_pre_header
      _
    $region3: #{encoder_forward.1} parent=1 // loop_header
      %s26 = sphi 0, %s30
      %p27 = scmp.ge.s32.totalorder %s26, 4
      %s36 = sphi 0, %s38
      %s39 = sphi 0, %s36
      %s40 = sphi 0, %s39
      %s56 = sphi 0, %s40
      %s62 = sphi 0, %s64
      %s65 = sphi 0, %s62
      %s66 = sphi 0, %s65
      %s82 = sphi 0, %s66
      %s88 = sphi 0, %s90
      %s91 = sphi 0, %s88
      %s92 = sphi 0, %s91
      %s108 = sphi 0, %s92
      %s112 = sphi 0, %s112
      %s114 = sphi 0, %s112
      %s115 = sphi 0, %s114
      %s129 = sphi 0, %s115
      %s133 = sphi 0, %s133
      %s135 = sphi 0, %s133
      %s136 = sphi 0, %s135
      %s150 = sphi 0, %s136
      %s154 = sphi 0, %s154
      %s156 = sphi 0, %s154
      %s157 = sphi 0, %s156
      %s171 = sphi 0, %s157
      %s175 = sphi 0, %s175
      %s177 = sphi 0, %s175
      %s178 = sphi 0, %s177
      %s192 = sphi 0, %s178
      %s196 = sphi 0, %s196
      %s198 = sphi 0, %s196
      %s199 = sphi 0, %s198
      %s213 = sphi 0, %s199
      %s217 = sphi 0, %s217
      %s219 = sphi 0, %s217
      %s220 = sphi 0, %s219
      %s234 = sphi 0, %s220
      %s238 = sphi 0, %s238
      %s240 = sphi 0, %s238
      %s241 = sphi 0, %s240
      %s255 = sphi 0, %s241
      %s259 = sphi 0, %s259
      %s261 = sphi 0, %s259
      %s262 = sphi 0, %s261
      %s276 = sphi 0, %s262
      %s282 = sphi 0, %s284
      %s285 = sphi 0, %s282
      %s286 = sphi 0, %s285
      %s302 = sphi 0, %s286
      %s308 = sphi 0, %s310
      %s311 = sphi 0, %s308
      %s312 = sphi 0, %s311
      %s328 = sphi 0, %s312
      %s334 = sphi 0, %s336
      %s337 = sphi 0, %s334
      %s338 = sphi 0, %s337
      %s354 = sphi 0, %s338
    $region4: #{encoder_forward.1} parent=1 // loop_header_branch
      %29 = sbr.rel (%p27) target = $region8
    $region5: #{encoder_forward.1} parent=1 // loop_body
      %s31 = ssub.s32 %s26, 1
      %s32 = ssub.s32 %s26, 2
      %s33 = sadd.s32 %s26, 1
      %s34 = ssub.s32 %s26, %s33
      %p35 = scmp.eq.s32.totalorder %s34, 0
      %s37 = sadd.s32 %s36, 1
      %s38 = scalar_select %p35, %s36, %s37
      %p41 = pneg %p35
      %p42 = scmp.eq.s32.totalorder %s26, 1
      %p43 = por %p41, %p42
      %p44 = scmp.ne.s32.totalorder %s36, %s39
      %p45 = scmp.eq.s32.totalorder %s26, 0
      %p46 = por %p44, %p45
      %p47 = scmp.ne.s32.totalorder %s36, %s39
      %p48 = scmp.eq.s32.totalorder %s31, 1
      %p49 = por %p47, %p48
      %p50 = scmp.ne.s32.totalorder %s39, %s40
      %p51 = scmp.eq.s32.totalorder %s31, 0
      %p52 = por %p50, %p51
      %p53 = scmp.ne.s32.totalorder %s39, %s40
      %p54 = scmp.eq.s32.totalorder %s32, 1
      %p55 = por %p53, %p54
      %p57 = scmp.ne.s32.totalorder %s40, %s56
      %p58 = scmp.eq.s32.totalorder %s32, 0
      %p59 = por %p57, %p58
      %s60 = ssub.s32 %s26, %s33
      %p61 = scmp.eq.s32.totalorder %s60, 0
      %s63 = sadd.s32 %s62, 1
      %s64 = scalar_select %p61, %s62, %s63
      %p67 = pneg %p61
      %p68 = scmp.eq.s32.totalorder %s26, 1
      %p69 = por %p67, %p68
      %p70 = scmp.ne.s32.totalorder %s62, %s65
      %p71 = scmp.eq.s32.totalorder %s26, 0
      %p72 = por %p70, %p71
      %p73 = scmp.ne.s32.totalorder %s62, %s65
      %p74 = scmp.eq.s32.totalorder %s31, 1
      %p75 = por %p73, %p74
      %p76 = scmp.ne.s32.totalorder %s65, %s66
      %p77 = scmp.eq.s32.totalorder %s31, 0
      %p78 = por %p76, %p77
      %p79 = scmp.ne.s32.totalorder %s65, %s66
      %p80 = scmp.eq.s32.totalorder %s32, 1
      %p81 = por %p79, %p80
      %p83 = scmp.ne.s32.totalorder %s66, %s82
      %p84 = scmp.eq.s32.totalorder %s32, 0
      %p85 = por %p83, %p84
      %s86 = ssub.s32 %s26, %s33
      %p87 = scmp.eq.s32.totalorder %s86, 0
      %s89 = sadd.s32 %s88, 1
      %s90 = scalar_select %p87, %s88, %s89
      %p93 = pneg %p87
      %p94 = scmp.eq.s32.totalorder %s26, 1
      %p95 = por %p93, %p94
      %p96 = scmp.ne.s32.totalorder %s88, %s91
      %p97 = scmp.eq.s32.totalorder %s26, 0
      %p98 = por %p96, %p97
      %p99 = scmp.ne.s32.totalorder %s88, %s91
      %p100 = scmp.eq.s32.totalorder %s31, 1
      %p101 = por %p99, %p100
      %p102 = scmp.ne.s32.totalorder %s91, %s92
      %p103 = scmp.eq.s32.totalorder %s31, 0
      %p104 = por %p102, %p103
      %p105 = scmp.ne.s32.totalorder %s91, %s92
      %p106 = scmp.eq.s32.totalorder %s32, 1
      %p107 = por %p105, %p106
      %p109 = scmp.ne.s32.totalorder %s92, %s108
      %p110 = scmp.eq.s32.totalorder %s32, 0
      %p111 = por %p109, %p110
      %s113 = sadd.s32 %s112, 1
      %p116 = scmp.eq.s32.totalorder %s26, 1
      %p117 = scmp.ne.s32.totalorder %s112, %s114
      %p118 = scmp.eq.s32.totalorder %s26, 0
      %p119 = por %p117, %p118
      %p120 = scmp.ne.s32.totalorder %s112, %s114
      %p121 = scmp.eq.s32.totalorder %s31, 1
      %p122 = por %p120, %p121
      %p123 = scmp.ne.s32.totalorder %s114, %s115
      %p124 = scmp.eq.s32.totalorder %s31, 0
      %p125 = por %p123, %p124
      %p126 = scmp.ne.s32.totalorder %s114, %s115
      %p127 = scmp.eq.s32.totalorder %s32, 1
      %p128 = por %p126, %p127
      %p130 = scmp.ne.s32.totalorder %s115, %s129
      %p131 = scmp.eq.s32.totalorder %s32, 0
      %p132 = por %p130, %p131
      %s134 = sadd.s32 %s133, 1
      %p137 = scmp.eq.s32.totalorder %s26, 1
      %p138 = scmp.ne.s32.totalorder %s133, %s135
      %p139 = scmp.eq.s32.totalorder %s26, 0
      %p140 = por %p138, %p139
      %p141 = scmp.ne.s32.totalorder %s133, %s135
      %p142 = scmp.eq.s32.totalorder %s31, 1
      %p143 = por %p141, %p142
      %p144 = scmp.ne.s32.totalorder %s135, %s136
      %p145 = scmp.eq.s32.totalorder %s31, 0
      %p146 = por %p144, %p145
      %p147 = scmp.ne.s32.totalorder %s135, %s136
      %p148 = scmp.eq.s32.totalorder %s32, 1
      %p149 = por %p147, %p148
      %p151 = scmp.ne.s32.totalorder %s136, %s150
      %p152 = scmp.eq.s32.totalorder %s32, 0
      %p153 = por %p151, %p152
      %s155 = sadd.s32 %s154, 1
      %p158 = scmp.eq.s32.totalorder %s26, 1
      %p159 = scmp.ne.s32.totalorder %s154, %s156
      %p160 = scmp.eq.s32.totalorder %s26, 0
      %p161 = por %p159, %p160
      %p162 = scmp.ne.s32.totalorder %s154, %s156
      %p163 = scmp.eq.s32.totalorder %s31, 1
      %p164 = por %p162, %p163
      %p165 = scmp.ne.s32.totalorder %s156, %s157
      %p166 = scmp.eq.s32.totalorder %s31, 0
      %p167 = por %p165, %p166
      %p168 = scmp.ne.s32.totalorder %s156, %s157
      %p169 = scmp.eq.s32.totalorder %s32, 1
      %p170 = por %p168, %p169
      %p172 = scmp.ne.s32.totalorder %s157, %s171
      %p173 = scmp.eq.s32.totalorder %s32, 0
      %p174 = por %p172, %p173
      %s176 = sadd.s32 %s175, 1
      %p179 = scmp.eq.s32.totalorder %s26, 1
      %p180 = scmp.ne.s32.totalorder %s175, %s177
      %p181 = scmp.eq.s32.totalorder %s26, 0
      %p182 = por %p180, %p181
      %p183 = scmp.ne.s32.totalorder %s175, %s177
      %p184 = scmp.eq.s32.totalorder %s31, 1
      %p185 = por %p183, %p184
      %p186 = scmp.ne.s32.totalorder %s177, %s178
      %p187 = scmp.eq.s32.totalorder %s31, 0
      %p188 = por %p186, %p187
      %p189 = scmp.ne.s32.totalorder %s177, %s178
      %p190 = scmp.eq.s32.totalorder %s32, 1
      %p191 = por %p189, %p190
      %p193 = scmp.ne.s32.totalorder %s178, %s192
      %p194 = scmp.eq.s32.totalorder %s32, 0
      %p195 = por %p193, %p194
      %s197 = sadd.s32 %s196, 1
      %p200 = scmp.eq.s32.totalorder %s26, 1
      %p201 = scmp.ne.s32.totalorder %s196, %s198
      %p202 = scmp.eq.s32.totalorder %s26, 0
      %p203 = por %p201, %p202
      %p204 = scmp.ne.s32.totalorder %s196, %s198
      %p205 = scmp.eq.s32.totalorder %s31, 1
      %p206 = por %p204, %p205
      %p207 = scmp.ne.s32.totalorder %s198, %s199
      %p208 = scmp.eq.s32.totalorder %s31, 0
      %p209 = por %p207, %p208
      %p210 = scmp.ne.s32.totalorder %s198, %s199
      %p211 = scmp.eq.s32.totalorder %s32, 1
      %p212 = por %p210, %p211
      %p214 = scmp.ne.s32.totalorder %s199, %s213
      %p215 = scmp.eq.s32.totalorder %s32, 0
      %p216 = por %p214, %p215
      %s218 = sadd.s32 %s217, 1
      %p221 = scmp.eq.s32.totalorder %s26, 1
      %p222 = scmp.ne.s32.totalorder %s217, %s219
      %p223 = scmp.eq.s32.totalorder %s26, 0
      %p224 = por %p222, %p223
      %p225 = scmp.ne.s32.totalorder %s217, %s219
      %p226 = scmp.eq.s32.totalorder %s31, 1
      %p227 = por %p225, %p226
      %p228 = scmp.ne.s32.totalorder %s219, %s220
      %p229 = scmp.eq.s32.totalorder %s31, 0
      %p230 = por %p228, %p229
      %p231 = scmp.ne.s32.totalorder %s219, %s220
      %p232 = scmp.eq.s32.totalorder %s32, 1
      %p233 = por %p231, %p232
      %p235 = scmp.ne.s32.totalorder %s220, %s234
      %p236 = scmp.eq.s32.totalorder %s32, 0
      %p237 = por %p235, %p236
      %s239 = sadd.s32 %s238, 1
      %p242 = scmp.eq.s32.totalorder %s26, 1
      %p243 = scmp.ne.s32.totalorder %s238, %s240
      %p244 = scmp.eq.s32.totalorder %s26, 0
      %p245 = por %p243, %p244
      %p246 = scmp.ne.s32.totalorder %s238, %s240
      %p247 = scmp.eq.s32.totalorder %s31, 1
      %p248 = por %p246, %p247
      %p249 = scmp.ne.s32.totalorder %s240, %s241
      %p250 = scmp.eq.s32.totalorder %s31, 0
      %p251 = por %p249, %p250
      %p252 = scmp.ne.s32.totalorder %s240, %s241
      %p253 = scmp.eq.s32.totalorder %s32, 1
      %p254 = por %p252, %p253
      %p256 = scmp.ne.s32.totalorder %s241, %s255
      %p257 = scmp.eq.s32.totalorder %s32, 0
      %p258 = por %p256, %p257
      %s260 = sadd.s32 %s259, 1
      %p263 = scmp.eq.s32.totalorder %s26, 1
      %p264 = scmp.ne.s32.totalorder %s259, %s261
      %p265 = scmp.eq.s32.totalorder %s26, 0
      %p266 = por %p264, %p265
      %p267 = scmp.ne.s32.totalorder %s259, %s261
      %p268 = scmp.eq.s32.totalorder %s31, 1
      %p269 = por %p267, %p268
      %p270 = scmp.ne.s32.totalorder %s261, %s262
      %p271 = scmp.eq.s32.totalorder %s31, 0
      %p272 = por %p270, %p271
      %p273 = scmp.ne.s32.totalorder %s261, %s262
      %p274 = scmp.eq.s32.totalorder %s32, 1
      %p275 = por %p273, %p274
      %p277 = scmp.ne.s32.totalorder %s262, %s276
      %p278 = scmp.eq.s32.totalorder %s32, 0
      %p279 = por %p277, %p278
      %s280 = ssub.s32 %s26, %s33
      %p281 = scmp.eq.s32.totalorder %s280, 0
      %s283 = sadd.s32 %s282, 1
      %s284 = scalar_select %p281, %s282, %s283
      %p287 = pneg %p281
      %p288 = scmp.eq.s32.totalorder %s26, 1
      %p289 = por %p287, %p288
      %p290 = scmp.ne.s32.totalorder %s282, %s285
      %p291 = scmp.eq.s32.totalorder %s26, 0
      %p292 = por %p290, %p291
      %p293 = scmp.ne.s32.totalorder %s282, %s285
      %p294 = scmp.eq.s32.totalorder %s31, 1
      %p295 = por %p293, %p294
      %p296 = scmp.ne.s32.totalorder %s285, %s286
      %p297 = scmp.eq.s32.totalorder %s31, 0
      %p298 = por %p296, %p297
      %p299 = scmp.ne.s32.totalorder %s285, %s286
      %p300 = scmp.eq.s32.totalorder %s32, 1
      %p301 = por %p299, %p300
      %p303 = scmp.ne.s32.totalorder %s286, %s302
      %p304 = scmp.eq.s32.totalorder %s32, 0
      %p305 = por %p303, %p304
      %s306 = ssub.s32 %s26, %s33
      %p307 = scmp.eq.s32.totalorder %s306, 0
      %s309 = sadd.s32 %s308, 1
      %s310 = scalar_select %p307, %s308, %s309
      %p313 = pneg %p307
      %p314 = scmp.eq.s32.totalorder %s26, 1
      %p315 = por %p313, %p314
      %p316 = scmp.ne.s32.totalorder %s308, %s311
      %p317 = scmp.eq.s32.totalorder %s26, 0
      %p318 = por %p316, %p317
      %p319 = scmp.ne.s32.totalorder %s308, %s311
      %p320 = scmp.eq.s32.totalorder %s31, 1
      %p321 = por %p319, %p320
      %p322 = scmp.ne.s32.totalorder %s311, %s312
      %p323 = scmp.eq.s32.totalorder %s31, 0
      %p324 = por %p322, %p323
      %p325 = scmp.ne.s32.totalorder %s311, %s312
      %p326 = scmp.eq.s32.totalorder %s32, 1
      %p327 = por %p325, %p326
      %p329 = scmp.ne.s32.totalorder %s312, %s328
      %p330 = scmp.eq.s32.totalorder %s32, 0
      %p331 = por %p329, %p330
      %s332 = ssub.s32 %s26, %s33
      %p333 = scmp.eq.s32.totalorder %s332, 0
      %s335 = sadd.s32 %s334, 1
      %s336 = scalar_select %p333, %s334, %s335
      %p339 = pneg %p333
      %p340 = scmp.eq.s32.totalorder %s26, 1
      %p341 = por %p339, %p340
      %p342 = scmp.ne.s32.totalorder %s334, %s337
      %p343 = scmp.eq.s32.totalorder %s26, 0
      %p344 = por %p342, %p343
      %p345 = scmp.ne.s32.totalorder %s334, %s337
      %p346 = scmp.eq.s32.totalorder %s31, 1
      %p347 = por %p345, %p346
      %p348 = scmp.ne.s32.totalorder %s337, %s338
      %p349 = scmp.eq.s32.totalorder %s31, 0
      %p350 = por %p348, %p349
      %p351 = scmp.ne.s32.totalorder %s337, %s338
      %p352 = scmp.eq.s32.totalorder %s32, 1
      %p353 = por %p351, %p352
      %p355 = scmp.ne.s32.totalorder %s338, %s354
      %p356 = scmp.eq.s32.totalorder %s32, 0
      %p357 = por %p355, %p356
      %p358 = scmp.le.s32.totalorder 1, %s26
      %p359 = scmp.lt.s32.totalorder %s26, 3
      %p360 = pnand %p358, %p359
      %p361 = pneg %p360
      // Predicated region
      $region9: #{encoder_forward.1} parent=5 // pred_check
        _
      $region10: #{encoder_forward.1} parent=5 // pred_check_branch
        %363 = sbr.rel (%p360) target = $region12
      $region11: #{encoder_forward.1} parent=5 // pred_region
        %s364 = ssub.s32 %s26, 1
        // Predicated region
        $region13: #{encoder_forward.1} parent=11 // pred_check
          %p365 = pneg %p125
        $region14: #{encoder_forward.1} parent=11 // pred_check_branch
          %367 = sbr.rel (%p365) target = $region16
        $region15: #{encoder_forward.1} parent=11 // pred_region
          _
        $region16: #{encoder_forward.1} parent=11 // pred_fallthru
          _
        // Predicated region
        $region17: #{encoder_forward.1} parent=11 // pred_check
          %p368 = pneg %p146
        $region18: #{encoder_forward.1} parent=11 // pred_check_branch
          %370 = sbr.rel (%p368) target = $region20
        $region19: #{encoder_forward.1} parent=11 // pred_region
          _
        $region20: #{encoder_forward.1} parent=11 // pred_fallthru
          _
        // Predicated region
        $region21: #{encoder_forward.1} parent=11 // pred_check
          %p371 = pneg %p167
        $region22: #{encoder_forward.1} parent=11 // pred_check_branch
          %373 = sbr.rel (%p371) target = $region24
        $region23: #{encoder_forward.1} parent=11 // pred_region
          _
        $region24: #{encoder_forward.1} parent=11 // pred_fallthru
          _
        // Predicated region
        $region25: #{encoder_forward.1} parent=11 // pred_check
          %p374 = pneg %p188
        $region26: #{encoder_forward.1} parent=11 // pred_check_branch
          %376 = sbr.rel (%p374) target = $region28
        $region27: #{encoder_forward.1} parent=11 // pred_region
          _
        $region28: #{encoder_forward.1} parent=11 // pred_fallthru
          _
        // Predicated region
        $region29: #{encoder_forward.1} parent=11 // pred_check
          %p377 = pneg %p209
        $region30: #{encoder_forward.1} parent=11 // pred_check_branch
          %379 = sbr.rel (%p377) target = $region32
        $region31: #{encoder_forward.1} parent=11 // pred_region
          _
        $region32: #{encoder_forward.1} parent=11 // pred_fallthru
          _
        // Predicated region
        $region33: #{encoder_forward.1} parent=11 // pred_check
          %p380 = pneg %p230
        $region34: #{encoder_forward.1} parent=11 // pred_check_branch
          %382 = sbr.rel (%p380) target = $region36
        $region35: #{encoder_forward.1} parent=11 // pred_region
          _
        $region36: #{encoder_forward.1} parent=11 // pred_fallthru
          _
        // Predicated region
        $region37: #{encoder_forward.1} parent=11 // pred_check
          %p383 = pneg %p251
        $region38: #{encoder_forward.1} parent=11 // pred_check_branch
          %385 = sbr.rel (%p383) target = $region40
        $region39: #{encoder_forward.1} parent=11 // pred_region
          _
        $region40: #{encoder_forward.1} parent=11 // pred_fallthru
          _
        // Predicated region
        $region41: #{encoder_forward.1} parent=11 // pred_check
          %p386 = pneg %p272
        $region42: #{encoder_forward.1} parent=11 // pred_check_branch
          %388 = sbr.rel (%p386) target = $region44
        $region43: #{encoder_forward.1} parent=11 // pred_region
          _
        $region44: #{encoder_forward.1} parent=11 // pred_fallthru
          _
      $region12: #{encoder_forward.1} parent=5 // pred_fallthru
        _
      %p389 = scmp.lt.s32.totalorder %s26, 2
      // Predicated region
      $region45: #{encoder_forward.1} parent=5 // pred_check
        %p390 = pneg %p389
      $region46: #{encoder_forward.1} parent=5 // pred_check_branch
        %392 = sbr.rel (%p390) target = $region48
      $region47: #{encoder_forward.1} parent=5 // pred_region
        // Predicated region
        $region49: #{encoder_forward.1} parent=47 // pred_check
          %p393 = pneg %p46
        $region50: #{encoder_forward.1} parent=47 // pred_check_branch
          %395 = sbr.rel (%p393) target = $region52
        $region51: #{encoder_forward.1} parent=47 // pred_region
          %p396 = scmp.lt.s32.totalorder %s26, 1
          %s397 = scalar_select %p396, %s26, 1
          %s398 = smul.addr %s397, 2
          %s399 = smul.addr %s398, 8
          %s400 = scalar_lea.vmem %s0, %s399
        $region52: #{encoder_forward.1} parent=47 // pred_fallthru
          _
        // Predicated region
        $region53: #{encoder_forward.1} parent=47 // pred_check
          %p401 = pneg %p72
        $region54: #{encoder_forward.1} parent=47 // pred_check_branch
          %403 = sbr.rel (%p401) target = $region56
        $region55: #{encoder_forward.1} parent=47 // pred_region
          %p404 = scmp.lt.s32.totalorder %s26, 1
          %s405 = scalar_select %p404, %s26, 1
          %s406 = smul.addr %s405, 8
          %s407 = scalar_lea.vmem %s1, %s406
        $region56: #{encoder_forward.1} parent=47 // pred_fallthru
          _
        // Predicated region
        $region57: #{encoder_forward.1} parent=47 // pred_check
          %p408 = pneg %p98
        $region58: #{encoder_forward.1} parent=47 // pred_check_branch
          %410 = sbr.rel (%p408) target = $region60
        $region59: #{encoder_forward.1} parent=47 // pred_region
          %p411 = scmp.lt.s32.totalorder %s26, 1
          %s412 = scalar_select %p411, %s26, 1
          %s413 = scalar_lea.vmem %s2, %s412
        $region60: #{encoder_forward.1} parent=47 // pred_fallthru
          _
      $region48: #{encoder_forward.1} parent=5 // pred_fallthru
        _
      %p414 = scmp.le.s32.totalorder 1, %s26
      %p415 = scmp.lt.s32.totalorder %s26, 3
      %p416 = pnand %p414, %p415
      %p417 = pneg %p416
      // Predicated region
      $region61: #{encoder_forward.1} parent=5 // pred_check
        _
      $region62: #{encoder_forward.1} parent=5 // pred_check_branch
        %419 = sbr.rel (%p416) target = $region64
      $region63: #{encoder_forward.1} parent=5 // pred_region
        %s420 = ssub.s32 %s26, 1
        %p421 = scmp.lt.s32.totalorder %s31, 1
        %s422 = scalar_select %p421, %s31, 1
        %s423 = smul.addr %s422, 2
        %s424 = smul.addr %s423, 8
        %s425 = scalar_lea.vmem %s0, %s424
        %p426 = pneg %p52
        %p427 = pneg %p49
        %p428 = scmp.lt.s32.totalorder %s31, 1
        %s429 = scalar_select %p428, %s31, 1
        %s430 = smul.addr %s429, 8
        %s431 = scalar_lea.vmem %s1, %s430
        %p432 = pneg %p78
        %p433 = pneg %p75
        %p434 = scmp.lt.s32.totalorder %s31, 1
        %s435 = scalar_select %p434, %s31, 1
        %s436 = scalar_lea.vmem %s2, %s435
        %p437 = pneg %p104
        %p438 = pneg %p101
        %p439 = pneg %p125
        %p440 = pneg %p122
        %p441 = pneg %p146
        %p442 = pneg %p143
        %p443 = pneg %p167
        %p444 = pneg %p164
        %p445 = pneg %p188
        %p446 = pneg %p185
        %p447 = pneg %p209
        %p448 = pneg %p206
        %p449 = pneg %p230
        %p450 = pneg %p227
        %p451 = pneg %p251
        %p452 = pneg %p248
        %p453 = pneg %p272
        %p454 = pneg %p269
        %p455 = pneg %p298
        %p456 = pneg %p295
        %s457 = sand.u32 %s285, 1
        %s458 = scalar_lea.sflag [#allocation3], %s457
        %s459 = sand.u32 %s285, 1
        %s460 = smul.addr %s459, 16
        %s461 = scalar_lea.vmem [#allocation2], %s460
        %p462 = pneg %p324
        %p463 = pneg %p321
        %s464 = sand.u32 %s311, 1
        %s465 = scalar_lea.sflag [#allocation5], %s464
        %s466 = sand.u32 %s311, 1
        %s467 = smul.addr %s466, 8
        %s468 = scalar_lea.vmem [#allocation4], %s467
        %p469 = pneg %p350
        %p470 = pneg %p347
        %p471 = scmp.lt.s32.totalorder %s31, 1
        %s472 = scalar_select %p471, %s31, 1
        %s473 = smul.addr %s472, 2
        %s474 = smul.addr %s473, 8
        %s475 = scalar_lea.vmem %s13, %s474
        %p476 = scmp.lt.s32.totalorder %s31, 1
        %s477 = scalar_select %p476, %s31, 1
        %s478 = smul.addr %s477, 2
        %s479 = smul.addr %s478, 8
        %s480 = scalar_lea.vmem %s0, %s479
        %p481 = scmp.lt.s32.totalorder %s31, 1
        %s482 = scalar_select %p481, %s31, 1
        %s483 = smul.addr %s482, 8
        %s484 = scalar_lea.vmem %s1, %s483
        %p485 = scmp.lt.s32.totalorder %s31, 1
        %s486 = scalar_select %p485, %s31, 1
        %s487 = scalar_lea.vmem %s2, %s486
        %p488 = scmp.lt.s32.totalorder %s31, 1
        %s489 = scalar_select %p488, %s31, 1
        %s490 = smul.addr %s489, 2
        %s491 = smul.addr %s490, 8
        %s492 = scalar_lea.vmem %s13, %s491
        %v494 = vld [vmem:[%s480] sm:$0xff]
        %v495 = vld [vmem:[%s480 + $0x8] sm:$0xff]
        %v496 = vld [vmem:[%s484] sm:$0xff]
        %v497 = vlaneseq
        %v498 = vshrl.u32 %v497, 7
        %vm499 = vcmp.eq.s32.totalorder %v498, 0
        %v500 = vld [vmem:[%s3] sm:$0x1]
        %v502 = vlaneseq
        %v503 = vshrl.u32 %v502, 7
        %v504 = vsub.s32 0, %v503
        %v505 = vrot.slane %v500, %v504
        %v507 = vsel %vm499, %v505, %v496
        %v508 = vpack.c.bf16 %v495, %v494
        %v509 = vld [vmem:[%s4] sm:$0xf]
        %v510 = vld [vmem:[%s5] sm:$0x1]
        %v512 = vlaneseq
        %v513 = vshrl.u32 %v512, 7
        %v514 = vsub.s32 0, %v513
        %v515 = vrot.slane %v510, %v514
        %vm517 = vcmask 64512
        %v519 = vsel %vm517, %v508, 0
        %vm521 = vcmask 1043456
        %v523 = vsel %vm521, %v509, 0
        %525 = vmatprep.subr.bf16.mxu0 0
        %526 = vmatpush1.bf16.msra.mxu0 0
        %527 = vmatprep.subr.bf16.mxu0 0
        %528 = vmatpush1.bf16.msra.mxu0 0
        %529 = vmatprep.subr.bf16.mxu0 0
        %530 = vmatpush1.bf16.msra.mxu0 0
        %531 = vmatprep.subr.bf16.mxu0 0
        %532 = vmatpush1.bf16.msra.mxu0 0
        %533 = vmatprep.subr.bf16.mxu0 0
        %534 = vmatpush1.bf16.msra.mxu0 0
        %535 = vmatprep.subr.bf16.mxu0 0
        %536 = vmatpush1.bf16.msra.mxu0 0
        %537 = vmatprep.subr.bf16.mxu0 0
        %538 = vmatpush1.bf16.msra.mxu0 0
        %539 = vmatprep.subr.bf16.mxu0 0
        %540 = vmatpush1.bf16.msra.mxu0 %v523
        %541 = vmatprep.subr.bf16.mxu0 0
        %542 = vmatpush2.bf16.msra.mxu0 0
        %543 = vmatprep.subr.bf16.mxu0 0
        %544 = vmatpush2.bf16.msra.mxu0 0
        %545 = vmatprep.subr.bf16.mxu0 0
        %546 = vmatpush2.bf16.msra.mxu0 0
        %547 = vmatprep.subr.bf16.mxu0 0
        %548 = vmatpush2.bf16.msra.mxu0 0
        %549 = vmatprep.subr.bf16.mxu0 0
        %550 = vmatpush2.bf16.msra.mxu0 0
        %551 = vmatprep.subr.bf16.mxu0 0
        %552 = vmatpush2.bf16.msra.mxu0 0
        %553 = vmatprep.subr.bf16.mxu0 0
        %554 = vmatpush2.bf16.msra.mxu0 0
        %555 = vmatprep.subr.bf16.mxu0 0
        %556 = vmatpush2.bf16.msra.mxu0 0
        %557 = vmatprep.mubr.bf16.mxu0 0
        %558 = vmatmul.mubr.bf16.gmra.mxu0 %v519
        %v559 = vpop.f32.mrf.mxu0
        %v560 = vadd.f32 %v515, %v559
        %v561 = vpop.f32.mrf.mxu0
        %v562 = vpop.f32.mrf.mxu0
        %v563 = vadd.f32 %v515, %v562
        %v564 = vpop.f32.mrf.mxu0
        %565 = vdwg.mxu0
        %v566 = vpack.c.bf16 %v507, %v507
        %v567 = vld [vmem:[%s6] sm:$0xf]
        %v568 = vld [vmem:[%s7] sm:$0x1]
        %v570 = vlaneseq
        %v571 = vshrl.u32 %v570, 7
        %v572 = vsub.s32 0, %v571
        %v573 = vrot.slane %v568, %v572
        %v576 = vsel %vm517, %v566, 0
        %v579 = vsel %vm521, %v567, 0
        %581 = vmatprep.subr.bf16.mxu0 0
        %582 = vmatpush1.bf16.msra.mxu0 0
        %583 = vmatprep.subr.bf16.mxu0 0
        %584 = vmatpush1.bf16.msra.mxu0 0
        %585 = vmatprep.subr.bf16.mxu0 0
        %586 = vmatpush1.bf16.msra.mxu0 0
        %587 = vmatprep.subr.bf16.mxu0 0
        %588 = vmatpush1.bf16.msra.mxu0 0
        %589 = vmatprep.subr.bf16.mxu0 0
        %590 = vmatpush1.bf16.msra.mxu0 0
        %591 = vmatprep.subr.bf16.mxu0 0
        %592 = vmatpush1.bf16.msra.mxu0 0
        %593 = vmatprep.subr.bf16.mxu0 0
        %594 = vmatpush1.bf16.msra.mxu0 0
        %595 = vmatprep.subr.bf16.mxu0 0
        %596 = vmatpush1.bf16.msra.mxu0 %v579
        %597 = vmatprep.subr.bf16.mxu0 0
        %598 = vmatpush2.bf16.msra.mxu0 0
        %599 = vmatprep.subr.bf16.mxu0 0
        %600 = vmatpush2.bf16.msra.mxu0 0
        %601 = vmatprep.subr.bf16.mxu0 0
        %602 = vmatpush2.bf16.msra.mxu0 0
        %603 = vmatprep.subr.bf16.mxu0 0
        %604 = vmatpush2.bf16.msra.mxu0 0
        %605 = vmatprep.subr.bf16.mxu0 0
        %606 = vmatpush2.bf16.msra.mxu0 0
        %607 = vmatprep.subr.bf16.mxu0 0
        %608 = vmatpush2.bf16.msra.mxu0 0
        %609 = vmatprep.subr.bf16.mxu0 0
        %610 = vmatpush2.bf16.msra.mxu0 0
        %611 = vmatprep.subr.bf16.mxu0 0
        %612 = vmatpush2.bf16.msra.mxu0 0
        %613 = vmatprep.mubr.bf16.mxu0 0
        %614 = vmatmul.mubr.bf16.gmra.mxu0 %v576
        %v615 = vpop.f32.mrf.mxu0
        %v616 = vadd.f32 %v573, %v615
        %v617 = vpop.f32.mrf.mxu0
        %v618 = vpop.f32.mrf.mxu0
        %v619 = vpop.f32.mrf.mxu0
        %620 = vdwg.mxu0
        %vm621 = vcmask 261120
        %622 = vst.msk [vmem:[%s461] sm:$0xff] %vm621, %v560
        %623 = vst.msk [vmem:[%s461 + $0x8] sm:$0xff] %vm621, %v563
        %624 = vst.msk [vmem:[%s468] sm:$0xff] %vm621, %v616
        %v625 = vld [vmem:[%s10] sm:$0xff]
        %v626 = vadd.f32 %v616, %v625
        %v627 = vmul.f32 %v560, 0.17677669
        %v628 = vmul.f32 %v563, 0.17677669
        %v629 = vpack.c.bf16 %v628, %v627
        %v630 = vpack.c.bf16 %v626, %v626
        %v631 = vld [vmem:[%s487] sm:$0x1]
        %v632 = vsub.f32 1.0, %v631
        %v633 = vmul.f32 %v632, -1e+09
        %v635 = vlaneseq
        %v636 = vshrl.u32 %v635, 7
        %v637 = vsub.s32 0, %v636
        %v638 = vrot.slane %v633, %v637
        %v641 = vsel %vm621, %v629, 0
        %v644 = vsel %vm621, %v630, 0
        %646 = vmatprep.subr.bf16.mxu0 0
        %647 = vmatpush1.bf16.xpose.msra.mxu0 0
        %648 = vmatprep.subr.bf16.mxu0 0
        %649 = vmatpush1.bf16.xpose.msra.mxu0 0
        %650 = vmatprep.subr.bf16.mxu0 0
        %651 = vmatpush1.bf16.xpose.msra.mxu0 0
        %652 = vmatprep.subr.bf16.mxu0 0
        %653 = vmatpush1.bf16.xpose.msra.mxu0 0
        %654 = vmatprep.subr.bf16.mxu0 0
        %655 = vmatpush1.bf16.xpose.msra.mxu0 0
        %656 = vmatprep.subr.bf16.mxu0 0
        %657 = vmatpush1.bf16.xpose.msra.mxu0 0
        %658 = vmatprep.subr.bf16.mxu0 0
        %659 = vmatpush1.bf16.xpose.msra.mxu0 0
        %660 = vmatprep.subr.bf16.mxu0 0
        %661 = vmatpush1.bf16.xpose.msra.mxu0 %v644
        %662 = vmatprep.subr.bf16.mxu0 0
        %663 = vmatpush2.bf16.xpose.msra.mxu0 0
        %664 = vmatprep.subr.bf16.mxu0 0
        %665 = vmatpush2.bf16.xpose.msra.mxu0 0
        %666 = vmatprep.subr.bf16.mxu0 0
        %667 = vmatpush2.bf16.xpose.msra.mxu0 0
        %668 = vmatprep.subr.bf16.mxu0 0
        %669 = vmatpush2.bf16.xpose.msra.mxu0 0
        %670 = vmatprep.subr.bf16.mxu0 0
        %671 = vmatpush2.bf16.xpose.msra.mxu0 0
        %672 = vmatprep.subr.bf16.mxu0 0
        %673 = vmatpush2.bf16.xpose.msra.mxu0 0
        %674 = vmatprep.subr.bf16.mxu0 0
        %675 = vmatpush2.bf16.xpose.msra.mxu0 0
        %676 = vmatprep.subr.bf16.mxu0 0
        %677 = vmatpush2.bf16.xpose.msra.mxu0 0
        %678 = vmatprep.mubr.bf16.mxu0 0
        %679 = vmatmul.mubr.bf16.gmra.mxu0 %v641
        %v680 = vpop.f32.mrf.mxu0
        %v681 = vadd.f32 %v638, %v680
        %v682 = vpop.f32.mrf.mxu0
        %v683 = vpop.f32.mrf.mxu0
        %v684 = vadd.f32 %v638, %v683
        %v685 = vpop.f32.mrf.mxu0
        %686 = vdwg.mxu0
        %v687 = vsel %vm517, %v681, -inf
        %688 = vmax.xlane.f32.xlu0 %v687
        %v689 = vpop.xlane.xlu0 %688
        %v690 = vsel %vm517, %v684, -inf
        %691 = vmax.xlane.f32.xlu0 %v690
        %v692 = vpop.xlane.xlu0 %691
        %v693 = vsub.f32 %v681, %v689
        %v694 = vsub.f32 %v684, %v692
        %v695 = vmul.f32 %v693, 1.442695
        %v696 = vpow.pop %v695
        %v697 = vmul.f32 %v694, 1.442695
        %v698 = vpow.pop %v697
        %v699 = vsel %vm517, %v696, 0.0
        %700 = vadd.xlane.f32.xlu0 %v699
        %v701 = vpop.xlane.xlu0 %700
        %v702 = vsel %vm517, %v698, 0.0
        %703 = vadd.xlane.f32.xlu0 %v702
        %v704 = vpop.xlane.xlu0 %703
        %v705 = vrcp.pop %v701
        %v706 = vrcp.pop %v704
        %v707 = vmul.f32 %v696, %v705
        %v708 = vmul.f32 %v698, %v706
        %v709 = vpack.c.bf16 %v708, %v707
        %v711 = vsel %vm517, %v709, 0
        %v713 = vsel %vm521, %v630, 0
        %715 = vmatprep.subr.bf16.mxu0 0
        %716 = vmatpush1.bf16.msra.mxu0 0
        %717 = vmatprep.subr.bf16.mxu0 0
        %718 = vmatpush1.bf16.msra.mxu0 0
        %719 = vmatprep.subr.bf16.mxu0 0
        %720 = vmatpush1.bf16.msra.mxu0 0
        %721 = vmatprep.subr.bf16.mxu0 0
        %722 = vmatpush1.bf16.msra.mxu0 0
        %723 = vmatprep.subr.bf16.mxu0 0
        %724 = vmatpush1.bf16.msra.mxu0 0
        %725 = vmatprep.subr.bf16.mxu0 0
        %726 = vmatpush1.bf16.msra.mxu0 0
        %727 = vmatprep.subr.bf16.mxu0 0
        %728 = vmatpush1.bf16.msra.mxu0 0
        %729 = vmatprep.subr.bf16.mxu0 0
        %730 = vmatpush1.bf16.msra.mxu0 %v713
        %731 = vmatprep.subr.bf16.mxu0 0
        %732 = vmatpush2.bf16.msra.mxu0 0
        %733 = vmatprep.subr.bf16.mxu0 0
        %734 = vmatpush2.bf16.msra.mxu0 0
        %735 = vmatprep.subr.bf16.mxu0 0
        %736 = vmatpush2.bf16.msra.mxu0 0
        %737 = vmatprep.subr.bf16.mxu0 0
        %738 = vmatpush2.bf16.msra.mxu0 0
        %739 = vmatprep.subr.bf16.mxu0 0
        %740 = vmatpush2.bf16.msra.mxu0 0
        %741 = vmatprep.subr.bf16.mxu0 0
        %742 = vmatpush2.bf16.msra.mxu0 0
        %743 = vmatprep.subr.bf16.mxu0 0
        %744 = vmatpush2.bf16.msra.mxu0 0
        %745 = vmatprep.subr.bf16.mxu0 0
        %746 = vmatpush2.bf16.msra.mxu0 0
        %747 = vmatprep.mubr.bf16.mxu0 0
        %748 = vmatmul.mubr.bf16.gmra.mxu0 %v711
        %v749 = vpop.f32.mrf.mxu0
        %v750 = vadd.f32 0.0, %v749
        %v751 = vpop.f32.mrf.mxu0
        %v752 = vpop.f32.mrf.mxu0
        %v753 = vadd.f32 0.0, %v752
        %v754 = vpop.f32.mrf.mxu0
        %755 = vdwg.mxu0
        %v756 = vpack.c.bf16 %v753, %v750
        %v757 = vld [vmem:[%s8] sm:$0xf]
        %v758 = vld [vmem:[%s8 + $0x4] sm:$0xf]
        %v759 = vld [vmem:[%s8 + $0x8] sm:$0xf]
        %v760 = vld [vmem:[%s8 + $0xc] sm:$0xf]
        %v761 = vld [vmem:[%s9] sm:$0x1]
        %v763 = vlaneseq
        %v764 = vshrl.u32 %v763, 7
        %v765 = vsub.s32 0, %v764
        %v766 = vrot.slane %v761, %v765
        %v772 = vunpack.c.l.b16 %v757
        %v773 = vunpack.c.l.b16 %v758
        %v774 = vunpack.c.l.b16 %v759
        %v775 = vunpack.c.l.b16 %v760
        %v776 = vpack.c.b16 %v773, %v772
        %v777 = vpack.c.b16 %v775, %v774
        %v781 = vsel %vm621, %v756, 0
        %783 = vmatprep.subr.bf16.mxu0 0
        %784 = vmatpush1.bf16.msra.mxu0 0
        %785 = vmatprep.subr.bf16.mxu0 0
        %786 = vmatpush1.bf16.msra.mxu0 0
        %787 = vmatprep.subr.bf16.mxu0 0
        %788 = vmatpush1.bf16.msra.mxu0 0
        %789 = vmatprep.subr.bf16.mxu0 0
        %790 = vmatpush1.bf16.msra.mxu0 0
        %791 = vmatprep.subr.bf16.mxu0 0
        %792 = vmatpush1.bf16.msra.mxu0 0
        %793 = vmatprep.subr.bf16.mxu0 0
        %794 = vmatpush1.bf16.msra.mxu0 0
        %795 = vmatprep.subr.bf16.mxu0 0
        %796 = vmatpush1.bf16.msra.mxu0 %v777
        %797 = vmatprep.subr.bf16.mxu0 0
        %798 = vmatpush1.bf16.msra.mxu0 %v776
        %799 = vmatprep.subr.bf16.mxu0 0
        %800 = vmatpush2.bf16.msra.mxu0 0
        %801 = vmatprep.subr.bf16.mxu0 0
        %802 = vmatpush2.bf16.msra.mxu0 0
        %803 = vmatprep.subr.bf16.mxu0 0
        %804 = vmatpush2.bf16.msra.mxu0 0
        %805 = vmatprep.subr.bf16.mxu0 0
        %806 = vmatpush2.bf16.msra.mxu0 0
        %807 = vmatprep.subr.bf16.mxu0 0
        %808 = vmatpush2.bf16.msra.mxu0 0
        %809 = vmatprep.subr.bf16.mxu0 0
        %810 = vmatpush2.bf16.msra.mxu0 0
        %811 = vmatprep.subr.bf16.mxu0 0
        %812 = vmatpush2.bf16.msra.mxu0 0
        %813 = vmatprep.subr.bf16.mxu0 0
        %814 = vmatpush2.bf16.msra.mxu0 0
        %815 = vmatprep.mubr.bf16.mxu0 0
        %816 = vmatmul.mubr.bf16.gmra.mxu0 %v781
        %v817 = vpop.f32.mrf.mxu0
        %v818 = vadd.f32 %v766, %v817
        %v819 = vpop.f32.mrf.mxu0
        %v820 = vpop.f32.mrf.mxu0
        %v821 = vadd.f32 %v766, %v820
        %v822 = vpop.f32.mrf.mxu0
        %823 = vdwg.mxu0
        %v824 = vsub.f32 0.0, %v818
        %v825 = vsub.f32 0.0, %v821
        %v826 = vmul.f32 %v824, 1.442695
        %v827 = vpow.pop %v826
        %v828 = vmul.f32 %v825, 1.442695
        %v829 = vpow.pop %v828
        %v830 = vadd.f32 %v827, 1.0
        %v831 = vadd.f32 %v829, 1.0
        %v832 = vrcp.pop %v830
        %v833 = vmul.f32 1.0, %v832
        %v834 = vrcp.pop %v831
        %v835 = vmul.f32 1.0, %v834
        %vm836 = vcmask 31744
        %837 = vst.msk [vmem:[%s492] sm:$0xff] %vm836, %v833
        %838 = vst.msk [vmem:[%s492 + $0x8] sm:$0xff] %vm836, %v835
        %s839 = sand.u32 %s285, 1
        %s840 = scalar_lea.sflag [#allocation3], %s839
        %s841 = sand.u32 %s285, 1
        %s842 = smul.addr %s841, 16
        %s843 = scalar_lea.vmem [#allocation2], %s842
        %s844 = sand.u32 %s311, 1
        %s845 = scalar_lea.sflag [#allocation5], %s844
        %s846 = sand.u32 %s311, 1
        %s847 = smul.addr %s846, 8
        %s848 = scalar_lea.vmem [#allocation4], %s847
        %p849 = scmp.lt.s32.totalorder %s31, 1
        %s850 = scalar_select %p849, %s31, 1
        %s851 = smul.addr %s850, 2
        %s852 = smul.addr %s851, 8
        %s853 = scalar_lea.vmem %s13, %s852
        // Predicated region
        $region65: #{encoder_forward.1} parent=63 // pred_check
          %p854 = pneg %p295
        $region66: #{encoder_forward.1} parent=63 // pred_check_branch
          %856 = sbr.rel (%p854) target = $region68
        $region67: #{encoder_forward.1} parent=63 // pred_region
          %s858 = ssub.s32 256, 256
          %859 = vsyncadd %s840, %s858
          %s860 = smul.addr %s31, 2
          %s861 = smul.addr %s860, 128
          %s862 = scalar_lea.hbm %s11, %s861
          %s863 = sshll.u32 %s843, 4
          %s864 = int_to_ptr.vmem [resolvable:$true] %s863
          %869 = dma.vmem_to_hbm [thread:$0]  %s864, 256, %s862, %s840, 128, 128, 8
        $region68: #{encoder_forward.1} parent=63 // pred_fallthru
          _
        // Predicated region
        $region69: #{encoder_forward.1} parent=63 // pred_check
          %p870 = pneg %p321
        $region70: #{encoder_forward.1} parent=63 // pred_check_branch
          %872 = sbr.rel (%p870) target = $region72
        $region71: #{encoder_forward.1} parent=63 // pred_region
          %s874 = ssub.s32 128, 128
          %875 = vsyncadd %s845, %s874
          %s876 = smul.addr %s31, 128
          %s877 = scalar_lea.hbm %s12, %s876
          %s879 = sshll.u32 %s848, 4
          %s880 = int_to_ptr.vmem [resolvable:$true] %s879
          %882 = dma.vmem_to_hbm [thread:$0]  %s880, 128, %s877, %s845
        $region72: #{encoder_forward.1} parent=63 // pred_fallthru
          _
        // Predicated region
        $region73: #{encoder_forward.1} parent=63 // pred_check
          %p883 = pneg %p347
        $region74: #{encoder_forward.1} parent=63 // pred_check_branch
          %885 = sbr.rel (%p883) target = $region76
        $region75: #{encoder_forward.1} parent=63 // pred_region
          _
        $region76: #{encoder_forward.1} parent=63 // pred_fallthru
          _
      $region64: #{encoder_forward.1} parent=5 // pred_fallthru
        _
      %p886 = scmp.le.s32.totalorder 2, %s26
      // Predicated region
      $region77: #{encoder_forward.1} parent=5 // pred_check
        %p887 = pneg %p886
      $region78: #{encoder_forward.1} parent=5 // pred_check_branch
        %889 = sbr.rel (%p887) target = $region80
      $region79: #{encoder_forward.1} parent=5 // pred_region
        %s890 = ssub.s32 %s26, 2
        // Predicated region
        $region81: #{encoder_forward.1} parent=79 // pred_check
          %p891 = pneg %p301
        $region82: #{encoder_forward.1} parent=79 // pred_check_branch
          %893 = sbr.rel (%p891) target = $region84
        $region83: #{encoder_forward.1} parent=79 // pred_region
          %s894 = sand.u32 %s286, 1
          %s895 = scalar_lea.sflag [#allocation3], %s894
          %s896 = sand.u32 %s286, 1
          %s897 = smul.addr %s896, 16
          %s898 = scalar_lea.vmem [#allocation2], %s897
          %899 = dma.done %s895, 256
        $region84: #{encoder_forward.1} parent=79 // pred_fallthru
          _
        // Predicated region
        $region85: #{encoder_forward.1} parent=79 // pred_check
          %p900 = pneg %p327
        $region86: #{encoder_forward.1} parent=79 // pred_check_branch
          %902 = sbr.rel (%p900) target = $region88
        $region87: #{encoder_forward.1} parent=79 // pred_region
          %s903 = sand.u32 %s312, 1
          %s904 = scalar_lea.sflag [#allocation5], %s903
          %s905 = sand.u32 %s312, 1
          %s906 = smul.addr %s905, 8
          %s907 = scalar_lea.vmem [#allocation4], %s906
          %908 = dma.done %s904, 128
        $region88: #{encoder_forward.1} parent=79 // pred_fallthru
          _
        // Predicated region
        $region89: #{encoder_forward.1} parent=79 // pred_check
          %p909 = pneg %p353
        $region90: #{encoder_forward.1} parent=79 // pred_check_branch
          %911 = sbr.rel (%p909) target = $region92
        $region91: #{encoder_forward.1} parent=79 // pred_region
          %p912 = scmp.lt.s32.totalorder %s32, 1
          %s913 = scalar_select %p912, %s32, 1
          %s914 = smul.addr %s913, 2
          %s915 = smul.addr %s914, 8
          %s916 = scalar_lea.vmem %s13, %s915
        $region92: #{encoder_forward.1} parent=79 // pred_fallthru
          _
      $region80: #{encoder_forward.1} parent=5 // pred_fallthru
        _
    $region6: #{encoder_forward.1} parent=1 // loop_footer
      %s30 = sadd.s32 1, %s26
    $region7: #{encoder_forward.1} parent=1 // loop_footer_branch
      %25 = sbr.rel target = $region3
    $region8: #{encoder_forward.1} parent=1 // loop_exit
      _
    %917 = vsyncpa [#allocation3], 1
    %s918 = scalar_lea.sflag [#allocation3], 1
    %919 = vsyncpa %s918, 1
    %920 = vsyncpa [#allocation5], 1
    %s921 = scalar_lea.sflag [#allocation5], 1
    %922 = vsyncpa %s921, 1

</llo_original>
